<compile_context>
chip_gen: v7x
topology: tpu7x:2x2x1
jax: 0.10.0
libtpu: 0.0.40
codegen_flags: <defaults>
</compile_context>

<pallas_src>
import math

import numpy as np
import jax
import jax.numpy as jnp
from jax import lax
from jax.experimental import pallas as pl
from jax.experimental.pallas import tpu as pltpu


_TB = 1024                     # batch tile for the tiled (grid) path
_EPS_SQ = 1e-24                # (F.normalize eps)^2
_SMALL_RESIDENT_BYTES = 4 << 20  # grid-free path byte gate (safe on every gen)


# --------------------------------------------------------------------------- #
# Kernels
# --------------------------------------------------------------------------- #
def _l2_normalize(v):
    sq = jnp.sum(v * v, axis=1, keepdims=True)
    return v * lax.rsqrt(jnp.maximum(sq, _EPS_SQ))


def _rnn_norm_kernel(xin_ref, xhid_ref, td_ref, w_in_ref, w_hid_ref,
                     w_td_ref, b_ref, o_ref):
    """tanh RNNCell on cat([x_in, td], 1) with hidden x_hid + row L2 norm.

    xin_ref  : [TB, D]  cell input embedding
    xhid_ref : [TB, D]  cell hidden embedding
    td_ref   : [TB, 1]
    w_in_ref : [D, D]   = W_ih[:, :D].T
    w_hid_ref: [D, D]   = W_hh.T
    w_td_ref : [1, D]   = W_ih[:, D:].T
    b_ref    : [1, D]   = b_ih + b_hh
    """
    xin = xin_ref[...].astype(jnp.float32)
    xhid = xhid_ref[...].astype(jnp.float32)
    td = td_ref[...].astype(jnp.float32)
    z = (jnp.dot(xin, w_in_ref[...], preferred_element_type=jnp.float32)
         + jnp.dot(xhid, w_hid_ref[...], preferred_element_type=jnp.float32)
         + td * w_td_ref[...]
         + b_ref[...])
    o_ref[...] = _l2_normalize(jnp.tanh(z))


def _fused_updates_kernel(u_ref, i_ref, td_ref, w_u_ref, w_i_ref,
                          w_td_ref, b_ref, o_ref):
    """item_update and user_update in one pass, single lane-dense output.

    u_ref : [TB, D] user embeddings (shared input DMA)
    i_ref : [TB, D] item embeddings (shared input DMA)
    w_u   : [D, 2D]  user-emb weights  (cols 0:D -> item cell, D:2D -> user cell)
    w_i   : [D, 2D]  item-emb weights
    o_ref : [TB, 2D] cols 0:D = normalized item update, D:2D = user update.
            Both halves are normalized in place with a lane-index mask (no
            cross-lane slice, one 2D-wide store).
    """
    D2 = o_ref.shape[-1]
    D = D2 // 2
    u = u_ref[...].astype(jnp.float32)
    it = i_ref[...].astype(jnp.float32)
    td = td_ref[...].astype(jnp.float32)
    z = (jnp.dot(u, w_u_ref[...], preferred_element_type=jnp.float32)
         + jnp.dot(it, w_i_ref[...], preferred_element_type=jnp.float32)
         + td * w_td_ref[...]
         + b_ref[...])
    h = jnp.tanh(z)
    sq = h * h
    lane = lax.broadcasted_iota(jnp.int32, (1, D2), 1)
    is_item = lane < D
    sum_item = jnp.sum(jnp.where(is_item, sq, 0.0), axis=1, keepdims=True)
    sum_user = jnp.sum(jnp.where(is_item, 0.0, sq), axis=1, keepdims=True)
    inv_item = lax.rsqrt(jnp.maximum(sum_item, _EPS_SQ))
    inv_user = lax.rsqrt(jnp.maximum(sum_user, _EPS_SQ))
    o_ref[...] = h * jnp.where(is_item, inv_item, inv_user)


# --------------------------------------------------------------------------- #
# pallas_call wrappers
# --------------------------------------------------------------------------- #
def _grid_free_ok(B, D, out_cols):
    # Everything resident in VMEM (inputs + output, f32) must stay small on all
    # generations (v5e scoped default 16 MiB, v6e 32 MiB, v7x 64 MiB physical).
    resident = B * (2 * D + 1 + out_cols) * 4
    return B <= _TB and resident <= _SMALL_RESIDENT_BYTES


def _call_single(xin, xhid, td, w_in, w_hid, w_td, b, B, D):
    out_shape = jax.ShapeDtypeStruct((B, D), jnp.float32)
    if not _grid_free_ok(B, D, out_cols=D):
        # B-tiled path; cdiv grid masks a partial last block, weights are
        # full-extent (tiny), batch axis "parallel" for v7x's two TensorCores.
        return pl.pallas_call(
            _rnn_norm_kernel,
            out_shape=out_shape,
            grid=(pl.cdiv(B, _TB),),
            in_specs=[
                pl.BlockSpec((_TB, D), lambda i: (i, 0)),
                pl.BlockSpec((_TB, D), lambda i: (i, 0)),
                pl.BlockSpec((_TB, 1), lambda i: (i, 0)),
                pl.BlockSpec((D, D), lambda i: (0, 0)),
                pl.BlockSpec((D, D), lambda i: (0, 0)),
                pl.BlockSpec((1, D), lambda i: (0, 0)),
                pl.BlockSpec((1, D), lambda i: (0, 0)),
            ],
            out_specs=pl.BlockSpec((_TB, D), lambda i: (i, 0)),
            compiler_params=pltpu.CompilerParams(
                dimension_semantics=("parallel",)),
        )(xin, xhid, td, w_in, w_hid, w_td, b)
    # Small problem: grid-free call, whole arrays resident in VMEM.
    vmem = pl.BlockSpec(memory_space=pltpu.MemorySpace.VMEM)
    return pl.pallas_call(
        _rnn_norm_kernel,
        out_shape=out_shape,
        in_specs=[vmem] * 7,
        out_specs=vmem,
    )(xin, xhid, td, w_in, w_hid, w_td, b)


def sitrec_forward(params, user_embeddings, item_embeddings,
                   timediffs=None, features=None, select=None):
    """Matches SITRec.forward: one update per call, selected by `select`."""
    B, D = user_embeddings.shape
    if select == "item_update":
        f = params["fused"]["item"]
        td = jnp.reshape(timediffs, (B, 1))
        return _call_single(user_embeddings, item_embeddings, td,
                            f["w_in"], f["w_hid"], f["w_td"], f["b"], B, D)
    elif select == "user_update":
        f = params["fused"]["user"]
        td = jnp.reshape(timediffs, (B, 1))
        return _call_single(item_embeddings, user_embeddings, td,
                            f["w_in"], f["w_hid"], f["w_td"], f["b"], B, D)
    # TODO(synk): forward() returns None for other `select` values in PyTorch; mirrored.
    return None


def sitrec_forward_both(params, user_embeddings, item_embeddings, timediffs,
                        split=True):
    """Fused path: item_update and user_update in a single pallas_call.

    Returns (item_update, user_update) if split=True, else the raw [B, 2D]
    array (cols 0:D item, D:2D user) so callers can consume it without an
    extra HBM slice pass.
    """
    B, D = user_embeddings.shape
    f = params["fused"]["both"]
    td = jnp.reshape(timediffs, (B, 1))
    out_shape = jax.ShapeDtypeStruct((B, 2 * D), jnp.float32)
    if not _grid_free_ok(B, D, out_cols=2 * D):
        out = pl.pallas_call(
            _fused_updates_kernel,
            out_shape=out_shape,
            grid=(pl.cdiv(B, _TB),),
            in_specs=[
                pl.BlockSpec((_TB, D), lambda i: (i, 0)),
                pl.BlockSpec((_TB, D), lambda i: (i, 0)),
                pl.BlockSpec((_TB, 1), lambda i: (i, 0)),
                pl.BlockSpec((D, 2 * D), lambda i: (0, 0)),
                pl.BlockSpec((D, 2 * D), lambda i: (0, 0)),
                pl.BlockSpec((1, 2 * D), lambda i: (0, 0)),
                pl.BlockSpec((1, 2 * D), lambda i: (0, 0)),
            ],
            out_specs=pl.BlockSpec((_TB, 2 * D), lambda i: (i, 0)),
            compiler_params=pltpu.CompilerParams(
                dimension_semantics=("parallel",)),
        )(user_embeddings, item_embeddings, td,
          f["w_u"], f["w_i"], f["w_td"], f["b"])
    else:
        vmem = pl.BlockSpec(memory_space=pltpu.MemorySpace.VMEM)
        out = pl.pallas_call(
            _fused_updates_kernel,
            out_shape=out_shape,
            in_specs=[vmem] * 7,
            out_specs=vmem,
        )(user_embeddings, item_embeddings, td,
          f["w_u"], f["w_i"], f["w_td"], f["b"])
    if split:
        return out[:, :D], out[:, D:]
    return out


# --------------------------------------------------------------------------- #
# Parameters (preprocessing hoisted to init — done exactly once)
# --------------------------------------------------------------------------- #
def prepare_fused_params(raw, D):
    def per_cell(c):
        w_ih = jnp.asarray(c["w_ih"], jnp.float32)      # [D, D+1]
        w_hh = jnp.asarray(c["w_hh"], jnp.float32)      # [D, D]
        w_x = w_ih[:, :D].T                             # multiplies the cell input emb
        w_td = w_ih[:, D:].T                             # [1, D]
        w_h = w_hh.T                                     # multiplies the hidden emb
        b = (jnp.asarray(c["b_ih"], jnp.float32)
             + jnp.asarray(c["b_hh"], jnp.float32)).reshape(1, D)
        return w_x, w_td, w_h, b

    # item_update: input = user_emb, hidden = item_emb (item_rnn)
    wxi, wtdi, whi, bi = per_cell(raw["item_rnn"])
    # user_update: input = item_emb, hidden = user_emb (user_rnn)
    wxu, wtdu, whu, bu = per_cell(raw["user_rnn"])

    return {
        # select-based path: z = x_in @ w_in + x_hid @ w_hid + td * w_td + b
        "item": {"w_in": wxi, "w_hid": whi, "w_td": wtdi, "b": bi},
        "user": {"w_in": wxu, "w_hid": whu, "w_td": wtdu, "b": bu},
        # fused path: z = user_emb @ w_u + item_emb @ w_i + td * w_td + b
        #   cols 0:D  -> item cell (user rows via W_ih, item rows via W_hh)
        #   cols D:2D -> user cell (user rows via W_hh, item rows via W_ih)
        "both": {
            "w_u": jnp.concatenate([wxi, whu], axis=1),    # [D, 2D]
            "w_i": jnp.concatenate([whi, wxu], axis=1),    # [D, 2D]
            "w_td": jnp.concatenate([wtdi, wtdu], axis=1),  # [1, 2D]
            "b": jnp.concatenate([bi, bu], axis=1),         # [1, 2D]
        },
    }


def init_sitrec_params(key, embedding_dim):
    """nn.RNNCell init: U(-1/sqrt(H), 1/sqrt(H)). Only params used by forward()."""
    D = embedding_dim
    I = D + 1
    stdv = 1.0 / math.sqrt(D)
    ks = jax.random.split(key, 8)
    u = lambda k, shape: jax.random.uniform(k, shape, jnp.float32, -stdv, stdv)
    raw = {
        "item_rnn": {"w_ih": u(ks[0], (D, I)), "w_hh": u(ks[1], (D, D)),
                     "b_ih": u(ks[2], (D,)), "b_hh": u(ks[3], (D,))},
        "user_rnn": {"w_ih": u(ks[4], (D, I)), "w_hh": u(ks[5], (D, D)),
                     "b_ih": u(ks[6], (D,)), "b_hh": u(ks[7], (D,))},
    }
    return {"raw": raw, "fused": prepare_fused_params(raw, D)}


# --------------------------------------------------------------------------- #
# numpy (float64) reference: cat -> RNNCell(tanh) -> F.normalize
# --------------------------------------------------------------------------- #
def _ref_update(x, h, td, cell):
    x = np.asarray(x, np.float64)
    h = np.asarray(h, np.float64)
    td = np.asarray(td, np.float64)
    w_ih = np.asarray(cell["w_ih"], np.float64)
    w_hh = np.asarray(cell["w_hh"], np.float64)
    b_ih = np.asarray(cell["b_ih"], np.float64)
    b_hh = np.asarray(cell["b_hh"], np.float64)
    z = np.concatenate([x, td], axis=1) @ w_ih.T + b_ih + h @ w_hh.T + b_hh
    hn = np.tanh(z)
    n = np.sqrt((hn * hn).sum(axis=1, keepdims=True))
    return hn / np.maximum(n, 1e-12)


if __name__ == "__main__":
    D = 32  # args.embedding_dim
    key = jax.random.PRNGKey(0)
    k_params, k_data = jax.random.split(key)
    params = init_sitrec_params(k_params, D)

    def run_and_check(B, ks):
        k_ue, k_ie, k_td = jax.random.split(ks, 3)
        ue = jax.random.normal(k_ue, (B, D), jnp.float32)
        ie = jax.random.normal(k_ie, (B, D), jnp.float32)
        td = jax.random.uniform(k_td, (B, 1), jnp.float32)

        item_out = sitrec_forward(params, ue, ie, timediffs=td, select="item_update")
        user_out = sitrec_forward(params, ue, ie, timediffs=td, select="user_update")
        item_f, user_f = sitrec_forward_both(params, ue, ie, td)
        jax.block_until_ready((item_out, user_out, item_f, user_f))

        assert item_out.shape == (B, D) and user_out.shape == (B, D)
        item_ref = _ref_update(ue, ie, td, params["raw"]["item_rnn"])
        user_ref = _ref_update(ie, ue, td, params["raw"]["user_rnn"])
        tol = dict(rtol=2e-3, atol=2e-3)
        np.testing.assert_allclose(np.asarray(item_out), item_ref, **tol)
        np.testing.assert_allclose(np.asarray(user_out), user_ref, **tol)
        np.testing.assert_allclose(np.asarray(item_f), item_ref, **tol)
        np.testing.assert_allclose(np.asarray(user_f), user_ref, **tol)

    k_small, k_big = jax.random.split(k_data)
    run_and_check(8, k_small)     # grid-free, VMEM-resident path
    run_and_check(1536, k_big)    # tiled cdiv-grid path (partial last block)
    print("KERNEL_OK")
</pallas_src>

<mosaic_0001>
module attributes {stable_mosaic.version = 11 : i64} {
  func.func @_rnn_norm_kernel(%arg0: memref<8x32xf32, #tpu.memory_space<vmem>>, %arg1: memref<8x32xf32, #tpu.memory_space<vmem>>, %arg2: memref<8x1xf32, #tpu.memory_space<vmem>>, %arg3: memref<32x32xf32, #tpu.memory_space<vmem>>, %arg4: memref<32x32xf32, #tpu.memory_space<vmem>>, %arg5: memref<1x32xf32, #tpu.memory_space<vmem>>, %arg6: memref<1x32xf32, #tpu.memory_space<vmem>>, %arg7: memref<8x32xf32, #tpu.memory_space<vmem>>) attributes {dimension_semantics = [], scalar_prefetch = 0 : i64, scratch_operands = 0 : i64, tpu.core_type = #tpu.core_type<tc>} {
    %c0 = arith.constant 0 : index
    %c0_0 = arith.constant 0 : index
    %0 = vector.load %arg0[%c0, %c0_0] : memref<8x32xf32, #tpu.memory_space<vmem>>, vector<8x32xf32>
    %c0_1 = arith.constant 0 : index
    %c0_2 = arith.constant 0 : index
    %1 = vector.load %arg1[%c0_1, %c0_2] : memref<8x32xf32, #tpu.memory_space<vmem>>, vector<8x32xf32>
    %c0_3 = arith.constant 0 : index
    %c0_4 = arith.constant 0 : index
    %2 = vector.load %arg2[%c0_3, %c0_4] : memref<8x1xf32, #tpu.memory_space<vmem>>, vector<8x1xf32>
    %c0_5 = arith.constant 0 : index
    %c0_6 = arith.constant 0 : index
    %3 = vector.load %arg3[%c0_5, %c0_6] : memref<32x32xf32, #tpu.memory_space<vmem>>, vector<32x32xf32>
    %cst = arith.constant dense<0.000000e+00> : vector<8x32xf32>
    %4 = tpu.matmul %0, %3, %cst {dimension_numbers = #tpu.dot_dimension_numbers<[1], [0], [0], [1], [0, 0, 1, 1], [], []>} : vector<8x32xf32>, vector<32x32xf32>, vector<8x32xf32> -> vector<8x32xf32>
    %c0_7 = arith.constant 0 : index
    %c0_8 = arith.constant 0 : index
    %5 = vector.load %arg4[%c0_7, %c0_8] : memref<32x32xf32, #tpu.memory_space<vmem>>, vector<32x32xf32>
    %cst_9 = arith.constant dense<0.000000e+00> : vector<8x32xf32>
    %6 = tpu.matmul %1, %5, %cst_9 {dimension_numbers = #tpu.dot_dimension_numbers<[1], [0], [0], [1], [0, 0, 1, 1], [], []>} : vector<8x32xf32>, vector<32x32xf32>, vector<8x32xf32> -> vector<8x32xf32>
    %7 = arith.addf %4, %6 : vector<8x32xf32>
    %c0_10 = arith.constant 0 : index
    %c0_11 = arith.constant 0 : index
    %8 = vector.load %arg5[%c0_10, %c0_11] : memref<1x32xf32, #tpu.memory_space<vmem>>, vector<1x32xf32>
    %9 = vector.broadcast %2 : vector<8x1xf32> to vector<8x32xf32>
    %10 = vector.broadcast %8 : vector<1x32xf32> to vector<8x32xf32>
    %11 = arith.mulf %9, %10 : vector<8x32xf32>
    %12 = arith.addf %7, %11 : vector<8x32xf32>
    %c0_12 = arith.constant 0 : index
    %c0_13 = arith.constant 0 : index
    %13 = vector.load %arg6[%c0_12, %c0_13] : memref<1x32xf32, #tpu.memory_space<vmem>>, vector<1x32xf32>
    %14 = vector.broadcast %13 : vector<1x32xf32> to vector<8x32xf32>
    %15 = arith.addf %12, %14 : vector<8x32xf32>
    %16 = math.tanh %15 : vector<8x32xf32>
    %17 = arith.mulf %16, %16 : vector<8x32xf32>
    %cst_14 = arith.constant dense<0.000000e+00> : vector<8xf32>
    %18 = vector.multi_reduction <add>, %17, %cst_14 [1] : vector<8x32xf32> to vector<8xf32>
    %19 = vector.shape_cast %18 : vector<8xf32> to vector<8x1xf32>
    %cst_15 = arith.constant 1.000000e-24 : f32
    %20 = vector.broadcast %cst_15 : f32 to vector<8x1xf32>
    %21 = arith.maximumf %19, %20 : vector<8x1xf32>
    %22 = math.rsqrt %21 : vector<8x1xf32>
    %23 = vector.broadcast %22 : vector<8x1xf32> to vector<8x32xf32>
    %24 = arith.mulf %16, %23 : vector<8x32xf32>
    %c0_16 = arith.constant 0 : index
    %c0_17 = arith.constant 0 : index
    %25 = vector.load %arg7[%c0_16, %c0_17] : memref<8x32xf32, #tpu.memory_space<vmem>>, vector<8x32xf32>
    tpu.vector_store %arg7[%c0_16, %c0_17], %24 {strides = array<i32>} : memref<8x32xf32, #tpu.memory_space<vmem>>, vector<8x32xf32>,
    return
  }
}

</mosaic_0001>

<llo_original>
// kernel: tpu_custom_call.1
$region0: #{tpu_custom_call.1}
  #allocation0 [shape = 'u32[]', space=smem, size = 0x4, offset = 0x4, fixed_abs, tag = 'smem constant byte address 0x4 - core index']
  #allocation1 [shape = 'u32[144,128]{1,0:T(1,128)}', space=vmem, size = 0x12000, scoped, tag = 'internal scratch']
  %s0 = inlined_call_operand.vmem [shape: f32[8,32], index: 0, kind: input, shape index: {}]
  %s1 = inlined_call_operand.hbm [shape: f32[8,32], index: 1, kind: input, shape index: {}]
  %s2 = inlined_call_operand.vmem [shape: f32[8,1], index: 2, kind: input, shape index: {}]
  %s3 = inlined_call_operand.hbm [shape: f32[32,32], index: 3, kind: input, shape index: {}]
  %s4 = inlined_call_operand.hbm [shape: f32[32,32], index: 4, kind: input, shape index: {}]
  %s5 = inlined_call_operand.vmem [shape: f32[1,32], index: 5, kind: input, shape index: {}]
  %s6 = inlined_call_operand.vmem [shape: f32[1,32], index: 6, kind: input, shape index: {}]
  %s7 = inlined_call_operand.hbm [shape: f32[8,32], index: 7, kind: output, shape index: {}]
  %s8 = sld [smem:[#allocation0]]
  $region50: #{tpu_custom_call.1} parent=0
    _
  %s10 = ssub.s32 1, %s8
  %s11 = scalar_select 0, %s10, %s8
  $region1: #{tpu_custom_call.1} parent=0
    #allocation2 [shape = 'u8[4096]{0}', space=vmem, size = 0x1000, scoped, tag = 'input window, operand 1, single buffered']
    #allocation3 [shape = 's32[1]{0}', space=sflag, size = 0x4, scoped, tag = 'scoped memory for tpu_custom_call.1']
    #allocation4 [shape = 's32[1]{0}', space=sflag, size = 0x4, scoped, tag = 'scoped memory for tpu_custom_call.1']
    #allocation5 [shape = 'u8[16384]{0}', space=vmem, size = 0x4000, scoped, tag = 'input window, operand 3, single buffered']
    #allocation6 [shape = 's32[1]{0}', space=sflag, size = 0x4, scoped, tag = 'scoped memory for tpu_custom_call.1']
    #allocation7 [shape = 'u8[16384]{0}', space=vmem, size = 0x4000, scoped, tag = 'input window, operand 4, single buffered']
    #allocation8 [shape = 'u8[4096]{0}', space=vmem, size = 0x1000, scoped, tag = 'output window, operand 0, single buffered']
    %12 = vsyncpa [#allocation3], 0
    %13 = vsyncpa [#allocation6], 0
    %14 = vsyncpa [#allocation4], 0
    // Predicated region
    $region2: #{tpu_custom_call.1} parent=1 // pred_check
      _
    $region3: #{tpu_custom_call.1} parent=1 // pred_check_branch
      %16 = sbr.rel (0) target = $region5
    $region4: #{tpu_custom_call.1} parent=1 // pred_region
      _
    $region5: #{tpu_custom_call.1} parent=1 // pred_fallthru
      _
    // Predicated region
    $region6: #{tpu_custom_call.1} parent=1 // pred_check
      _
    $region7: #{tpu_custom_call.1} parent=1 // pred_check_branch
      %18 = sbr.rel (0) target = $region9
    $region8: #{tpu_custom_call.1} parent=1 // pred_region
      %s20 = ssub.s32 128, 128
      %21 = vsyncadd [#allocation3], %s20
      %s23 = sshll.u32 [#allocation2], 4
      %s24 = int_to_ptr.vmem [resolvable:$true] %s23
      %26 = dma.hbm_to_vmem [thread:$0]  %s1, 128, %s24, [#allocation3]
    $region9: #{tpu_custom_call.1} parent=1 // pred_fallthru
      _
    // Predicated region
    $region10: #{tpu_custom_call.1} parent=1 // pred_check
      _
    $region11: #{tpu_custom_call.1} parent=1 // pred_check_branch
      %28 = sbr.rel (0) target = $region13
    $region12: #{tpu_custom_call.1} parent=1 // pred_region
      _
    $region13: #{tpu_custom_call.1} parent=1 // pred_fallthru
      _
    // Predicated region
    $region14: #{tpu_custom_call.1} parent=1 // pred_check
      _
    $region15: #{tpu_custom_call.1} parent=1 // pred_check_branch
      %30 = sbr.rel (0) target = $region17
    $region16: #{tpu_custom_call.1} parent=1 // pred_region
      %s32 = ssub.s32 512, 512
      %33 = vsyncadd [#allocation6], %s32
      %s34 = sshll.u32 [#allocation5], 4
      %s35 = int_to_ptr.vmem [resolvable:$true] %s34
      %40 = dma.hbm_to_vmem [thread:$0]  %s3, 512, %s35, [#allocation6], 128, 128, 8
    $region17: #{tpu_custom_call.1} parent=1 // pred_fallthru
      _
    // Predicated region
    $region18: #{tpu_custom_call.1} parent=1 // pred_check
      _
    $region19: #{tpu_custom_call.1} parent=1 // pred_check_branch
      %42 = sbr.rel (0) target = $region21
    $region20: #{tpu_custom_call.1} parent=1 // pred_region
      %s44 = ssub.s32 512, 512
      %45 = vsyncadd [#allocation6], %s44
      %s46 = sshll.u32 [#allocation7], 4
      %s47 = int_to_ptr.vmem [resolvable:$true] %s46
      %52 = dma.hbm_to_vmem [thread:$0]  %s4, 512, %s47, [#allocation6], 128, 128, 8
    $region21: #{tpu_custom_call.1} parent=1 // pred_fallthru
      _
    // Predicated region
    $region22: #{tpu_custom_call.1} parent=1 // pred_check
      _
    $region23: #{tpu_custom_call.1} parent=1 // pred_check_branch
      %54 = sbr.rel (0) target = $region25
    $region24: #{tpu_custom_call.1} parent=1 // pred_region
      _
    $region25: #{tpu_custom_call.1} parent=1 // pred_fallthru
      _
    // Predicated region
    $region26: #{tpu_custom_call.1} parent=1 // pred_check
      _
    $region27: #{tpu_custom_call.1} parent=1 // pred_check_branch
      %56 = sbr.rel (0) target = $region29
    $region28: #{tpu_custom_call.1} parent=1 // pred_region
      _
    $region29: #{tpu_custom_call.1} parent=1 // pred_fallthru
      _
    // Predicated region
    $region30: #{tpu_custom_call.1} parent=1 // pred_check
      _
    $region31: #{tpu_custom_call.1} parent=1 // pred_check_branch
      %58 = sbr.rel (0) target = $region33
    $region32: #{tpu_custom_call.1} parent=1 // pred_region
      %59 = dma.done [#allocation3], 128
    $region33: #{tpu_custom_call.1} parent=1 // pred_fallthru
      _
    // Predicated region
    $region34: #{tpu_custom_call.1} parent=1 // pred_check
      _
    $region35: #{tpu_custom_call.1} parent=1 // pred_check_branch
      %61 = sbr.rel (0) target = $region37
    $region36: #{tpu_custom_call.1} parent=1 // pred_region
      %62 = dma.done [#allocation6], 512
    $region37: #{tpu_custom_call.1} parent=1 // pred_fallthru
      _
    // Predicated region
    $region38: #{tpu_custom_call.1} parent=1 // pred_check
      _
    $region39: #{tpu_custom_call.1} parent=1 // pred_check_branch
      %64 = sbr.rel (0) target = $region41
    $region40: #{tpu_custom_call.1} parent=1 // pred_region
      %65 = dma.done [#allocation6], 512
    $region41: #{tpu_custom_call.1} parent=1 // pred_fallthru
      _
    %v66 = vld [vmem:[%s0] sm:$0xff]
    %v67 = vld [vmem:[#allocation2] sm:$0xff]
    %v68 = vld [vmem:[%s2] sm:$0xff]
    %v69 = vld [vmem:[#allocation5] sm:$0xff]
    %v70 = vld [vmem:[#allocation5 + $0x8] sm:$0xff]
    %v71 = vld [vmem:[#allocation5 + $0x10] sm:$0xff]
    %v72 = vld [vmem:[#allocation5 + $0x18] sm:$0xff]
    %v73 = vld [vmem:[#allocation7] sm:$0xff]
    %v74 = vld [vmem:[#allocation7 + $0x8] sm:$0xff]
    %v75 = vld [vmem:[#allocation7 + $0x10] sm:$0xff]
    %v76 = vld [vmem:[#allocation7 + $0x18] sm:$0xff]
    %vm77 = vcmask 261120
    %v79 = vsel %vm77, %v67, 0
    %81 = vmatprep.subr.mxu0 0.0
    %82 = vmatpush1.msra.mxu0 %v73
    %83 = vmatprep.subr.mxu0 0.0
    %84 = vmatpush1.msra.mxu0 %v74
    %85 = vmatprep.subr.mxu0 0.0
    %86 = vmatpush1.msra.mxu0 %v75
    %87 = vmatprep.subr.mxu0 0.0
    %88 = vmatpush1.msra.mxu0 %v76
    %89 = vmatprep.subr.mxu0 0.0
    %90 = vmatpush1.msra.mxu0 0.0
    %91 = vmatprep.subr.mxu0 0.0
    %92 = vmatpush1.msra.mxu0 0.0
    %93 = vmatprep.subr.mxu0 0.0
    %94 = vmatpush1.msra.mxu0 0.0
    %95 = vmatprep.subr.mxu0 0.0
    %96 = vmatpush1.msra.mxu0 0.0
    %97 = vmatprep.subr.mxu0 0.0
    %98 = vmatpush1.msra.mxu0 0.0
    %99 = vmatprep.subr.mxu0 0.0
    %100 = vmatpush1.msra.mxu0 0.0
    %101 = vmatprep.subr.mxu0 0.0
    %102 = vmatpush1.msra.mxu0 0.0
    %103 = vmatprep.subr.mxu0 0.0
    %104 = vmatpush1.msra.mxu0 0.0
    %105 = vmatprep.subr.mxu0 0.0
    %106 = vmatpush1.msra.mxu0 0.0
    %107 = vmatprep.subr.mxu0 0.0
    %108 = vmatpush1.msra.mxu0 0.0
    %109 = vmatprep.subr.mxu0 0.0
    %110 = vmatpush1.msra.mxu0 0.0
    %111 = vmatprep.subr.mxu0 0.0
    %112 = vmatpush1.msra.mxu0 0.0
    %113 = vmatprep.subr.mxu0 0.0
    %114 = vmatpush1.msra.mxu0 0.0
    %115 = vmatprep.subr.mxu0 0.0
    %116 = vmatpush1.msra.mxu0 0.0
    %117 = vmatprep.subr.mxu0 0.0
    %118 = vmatpush1.msra.mxu0 0.0
    %119 = vmatprep.subr.mxu0 0.0
    %120 = vmatpush1.msra.mxu0 0.0
    %121 = vmatprep.subr.mxu0 0.0
    %122 = vmatpush1.msra.mxu0 0.0
    %123 = vmatprep.subr.mxu0 0.0
    %124 = vmatpush1.msra.mxu0 0.0
    %125 = vmatprep.subr.mxu0 0.0
    %126 = vmatpush1.msra.mxu0 0.0
    %127 = vmatprep.subr.mxu0 0.0
    %128 = vmatpush1.msra.mxu0 0.0
    %129 = vmatprep.subr.mxu0 0.0
    %130 = vmatpush1.msra.mxu0 0.0
    %131 = vmatprep.subr.mxu0 0.0
    %132 = vmatpush1.msra.mxu0 0.0
    %133 = vmatprep.subr.mxu0 0.0
    %134 = vmatpush1.msra.mxu0 0.0
    %135 = vmatprep.subr.mxu0 0.0
    %136 = vmatpush1.msra.mxu0 0.0
    %137 = vmatprep.subr.mxu0 0.0
    %138 = vmatpush1.msra.mxu0 0.0
    %139 = vmatprep.subr.mxu0 0.0
    %140 = vmatpush1.msra.mxu0 0.0
    %141 = vmatprep.subr.mxu0 0.0
    %142 = vmatpush1.msra.mxu0 0.0
    %143 = vmatprep.subr.mxu0 0.0
    %144 = vmatpush1.msra.mxu0 0.0
    %145 = vmatprep.mubr.f32.mxu0 0.0
    %146 = vmatmul.mubr.f32.gmra.mrb[0].mxu0 %v79
    %v147 = vpop.f32.mrb[0].mxu0
    %v148 = vadd.f32 0.0, %v147
    %v149 = vpop.f32.mrb[0].mxu0
    %150 = vdwg.mxu0
    %v152 = vsel %vm77, %v66, 0
    %154 = vmatprep.subr.mxu0 0.0
    %155 = vmatpush1.msra.mxu0 %v69
    %156 = vmatprep.subr.mxu0 0.0
    %157 = vmatpush1.msra.mxu0 %v70
    %158 = vmatprep.subr.mxu0 0.0
    %159 = vmatpush1.msra.mxu0 %v71
    %160 = vmatprep.subr.mxu0 0.0
    %161 = vmatpush1.msra.mxu0 %v72
    %162 = vmatprep.subr.mxu0 0.0
    %163 = vmatpush1.msra.mxu0 0.0
    %164 = vmatprep.subr.mxu0 0.0
    %165 = vmatpush1.msra.mxu0 0.0
    %166 = vmatprep.subr.mxu0 0.0
    %167 = vmatpush1.msra.mxu0 0.0
    %168 = vmatprep.subr.mxu0 0.0
    %169 = vmatpush1.msra.mxu0 0.0
    %170 = vmatprep.subr.mxu0 0.0
    %171 = vmatpush1.msra.mxu0 0.0
    %172 = vmatprep.subr.mxu0 0.0
    %173 = vmatpush1.msra.mxu0 0.0
    %174 = vmatprep.subr.mxu0 0.0
    %175 = vmatpush1.msra.mxu0 0.0
    %176 = vmatprep.subr.mxu0 0.0
    %177 = vmatpush1.msra.mxu0 0.0
    %178 = vmatprep.subr.mxu0 0.0
    %179 = vmatpush1.msra.mxu0 0.0
    %180 = vmatprep.subr.mxu0 0.0
    %181 = vmatpush1.msra.mxu0 0.0
    %182 = vmatprep.subr.mxu0 0.0
    %183 = vmatpush1.msra.mxu0 0.0
    %184 = vmatprep.subr.mxu0 0.0
    %185 = vmatpush1.msra.mxu0 0.0
    %186 = vmatprep.subr.mxu0 0.0
    %187 = vmatpush1.msra.mxu0 0.0
    %188 = vmatprep.subr.mxu0 0.0
    %189 = vmatpush1.msra.mxu0 0.0
    %190 = vmatprep.subr.mxu0 0.0
    %191 = vmatpush1.msra.mxu0 0.0
    %192 = vmatprep.subr.mxu0 0.0
    %193 = vmatpush1.msra.mxu0 0.0
    %194 = vmatprep.subr.mxu0 0.0
    %195 = vmatpush1.msra.mxu0 0.0
    %196 = vmatprep.subr.mxu0 0.0
    %197 = vmatpush1.msra.mxu0 0.0
    %198 = vmatprep.subr.mxu0 0.0
    %199 = vmatpush1.msra.mxu0 0.0
    %200 = vmatprep.subr.mxu0 0.0
    %201 = vmatpush1.msra.mxu0 0.0
    %202 = vmatprep.subr.mxu0 0.0
    %203 = vmatpush1.msra.mxu0 0.0
    %204 = vmatprep.subr.mxu0 0.0
    %205 = vmatpush1.msra.mxu0 0.0
    %206 = vmatprep.subr.mxu0 0.0
    %207 = vmatpush1.msra.mxu0 0.0
    %208 = vmatprep.subr.mxu0 0.0
    %209 = vmatpush1.msra.mxu0 0.0
    %210 = vmatprep.subr.mxu0 0.0
    %211 = vmatpush1.msra.mxu0 0.0
    %212 = vmatprep.subr.mxu0 0.0
    %213 = vmatpush1.msra.mxu0 0.0
    %214 = vmatprep.subr.mxu0 0.0
    %215 = vmatpush1.msra.mxu0 0.0
    %216 = vmatprep.subr.mxu0 0.0
    %217 = vmatpush1.msra.mxu0 0.0
    %218 = vmatprep.mubr.f32.mxu0 0.0
    %219 = vmatmul.mubr.f32.gmra.mrb[0].mxu0 %v152
    %v220 = vpop.f32.mrb[0].mxu0
    %v221 = vadd.f32 %v148, %v220
    %v222 = vpop.f32.mrb[0].mxu0
    %223 = vdwg.mxu0
    %v224 = vld [vmem:[%s5] sm:$0x1]
    %226 = vset.pattern.permute.xlu0 0
    %227 = vperm.xlu0 %226, %v68
    %v228 = vpop.permute.xlu0 %227
    %v231 = vlaneseq
    %v232 = vshrl.u32 %v231, 7
    %v233 = vsub.s32 0, %v232
    %v234 = vrot.slane %v224, %v233
    %v236 = vmul.f32 %v228, %v234
    %v237 = vadd.f32 %v221, %v236
    %v238 = vld [vmem:[%s6] sm:$0x1]
    %v240 = vlaneseq
    %v241 = vshrl.u32 %v240, 7
    %v242 = vsub.s32 0, %v241
    %v243 = vrot.slane %v238, %v242
    %v245 = vadd.f32 %v237, %v243
    %v246 = vtanh.pop %v245
    %v247 = vmul.f32 %v246, %v246
    %v248 = vsel %vm77, %v247, 0.0
    %249 = vadd.xlane.f32.xlu0 %v248
    %v250 = vpop.xlane.xlu0 %249
    %v251 = vmax.f32 %v250, 1e-24
    %v252 = vrsqrt.pop %v251
    %v253 = vmul.f32 %v246, %v252
    %254 = vst.msk [vmem:[#allocation8] sm:$0xff] %vm77, %v253
    // Predicated region
    $region42: #{tpu_custom_call.1} parent=1 // pred_check
      _
    $region43: #{tpu_custom_call.1} parent=1 // pred_check_branch
      %256 = sbr.rel (0) target = $region45
    $region44: #{tpu_custom_call.1} parent=1 // pred_region
      %s258 = ssub.s32 128, 128
      %259 = vsyncadd [#allocation4], %s258
      %s261 = sshll.u32 [#allocation8], 4
      %s262 = int_to_ptr.vmem [resolvable:$true] %s261
      %264 = dma.vmem_to_hbm [thread:$0]  %s262, 128, %s7, [#allocation4]
    $region45: #{tpu_custom_call.1} parent=1 // pred_fallthru
      _
    // Predicated region
    $region46: #{tpu_custom_call.1} parent=1 // pred_check
      _
    $region47: #{tpu_custom_call.1} parent=1 // pred_check_branch
      %266 = sbr.rel (0) target = $region49
    $region48: #{tpu_custom_call.1} parent=1 // pred_region
      %267 = dma.done [#allocation4], 128
    $region49: #{tpu_custom_call.1} parent=1 // pred_fallthru
      _
    %268 = vsyncpa [#allocation3], 1
    %269 = vsyncpa [#allocation6], 1
    %270 = vsyncpa [#allocation4], 1

</llo_original>
